<compile_context>
chip_gen: v6e
topology: v6e:2x2x1
jax: 0.10.0
libtpu: 0.0.40
codegen_flags: <defaults>
</compile_context>

<pallas_src>
from functools import partial
import math

import numpy as np
import jax
import jax.numpy as jnp
from jax.experimental import pallas as pl
from jax.experimental.pallas import tpu as pltpu

_LANES = 128
_MAX_TILE_ROWS = 1024            # 1024*128*4B = 512 KiB per f32 buffer
_PERCENT_EPS = 1e-6
_SEED_PRIME = 0x27D4EB2F         # odd constant for per-call seed mixing
_MANT_BITS = 23
_MANT_SCALE = float(1 << _MANT_BITS)     # 8388608.0

# int32 two's-complement views of the uint32 mixer constants (lowbias32-style)
_H_GOLDEN = -1640531527          # 0x9E3779B9
_H_M1 = 2146121005               # 0x7FEB352D
_H_M2 = -2073310581              # 0x846CA68B


def _round_up(v, m):
    return ((v + m - 1) // m) * m


def _hash32(key):
    """Avalanche hash on int32 with wrapping arithmetic.

    Logical right shifts are emulated with arithmetic shift + mask so the
    whole chain stays in int32 (robust on Mosaic TPU and in interpret mode).
    Identical results inside Pallas kernels and in plain XLA/jnp.
    """
    h = key * np.int32(_H_GOLDEN)
    h = h ^ ((h >> 16) & 0xFFFF)
    h = h * np.int32(_H_M1)
    h = h ^ ((h >> 15) & 0x1FFFF)
    h = h * np.int32(_H_M2)
    h = h ^ ((h >> 16) & 0xFFFF)
    return h


def _mantissa(idx, seed_mix):
    """23-bit uniform integer in [0, 2^23) per element index.  rand = m / 2^23."""
    h = _hash32(idx ^ seed_mix)
    return (h >> 9) & 0x7FFFFF


def _tile_iota(tile_rows):
    """Flat element index within a (tile_rows, 128) tile (int32)."""
    r = jax.lax.broadcasted_iota(jnp.int32, (tile_rows, _LANES), 0)
    l = jax.lax.broadcasted_iota(jnp.int32, (tile_rows, _LANES), 1)
    return r * _LANES + l


def _make_count_kernel(tile_rows, n_valid):
    tile_elems = tile_rows * _LANES

    def kernel(seed_ref, thr_ref, cnt_ref):
        i = pl.program_id(0)
        idx = _tile_iota(tile_rows) + i * tile_elems
        m = _mantissa(idx, seed_ref[0])
        keep = jnp.logical_and(m >= thr_ref[0], idx < n_valid)  # mask padding
        s = jnp.sum(keep.astype(jnp.float32))                   # per-tile count
        cnt_ref[0] = jnp.broadcast_to(s, (8, _LANES))           # layout-legal block

    return kernel


def _make_disout_kernel(tile_rows):
    tile_elems = tile_rows * _LANES

    def kernel(seed_ref, thr_ref, c1_ref, c2_ref, invp_ref, x_ref, o_ref):
        i = pl.program_id(0)
        idx = _tile_iota(tile_rows) + i * tile_elems
        m = _mantissa(idx, seed_ref[0])                 # same stream as pass 1
        keep = m >= thr_ref[0]
        kept = x_ref[...].astype(jnp.float32) * invp_ref[0]
        dropped = m.astype(jnp.float32) * c1_ref[0] - c2_ref[0]   # alpha*0.01*(u-0.5)
        o_ref[...] = jnp.where(keep, kept, dropped).astype(o_ref.dtype)

    return kernel


@partial(jax.jit, static_argnames=("tile_rows", "n_valid"))
def _disout_forward(x2d, seed_mix, thr, c1, c2, *, tile_rows, n_valid):
    padded_rows, lanes = x2d.shape
    assert lanes == _LANES and padded_rows % tile_rows == 0
    num_tiles = padded_rows // tile_rows
    n_pad = padded_rows * _LANES

    seed_arr = jnp.reshape(seed_mix.astype(jnp.int32), (1,))
    thr_arr = jnp.reshape(thr.astype(jnp.int32), (1,))
    c1_arr = jnp.reshape(c1.astype(jnp.float32), (1,))
    c2_arr = jnp.reshape(c2.astype(jnp.float32), (1,))
    smem = pl.BlockSpec(memory_space=pltpu.MemorySpace.SMEM)

    # ---- pass 1: kept-element count (compute-only, megacore-parallel) ------
    partials = pl.pallas_call(
        _make_count_kernel(tile_rows, n_valid),
        out_shape=jax.ShapeDtypeStruct((num_tiles, 8, _LANES), jnp.float32),
        grid=(num_tiles,),
        in_specs=[smem, smem],
        out_specs=pl.BlockSpec((1, 8, _LANES), lambda i: (i, 0, 0)),
        compiler_params=pltpu.CompilerParams(
            dimension_semantics=("parallel",),
            vmem_limit_bytes=32 * 1024 * 1024),
    )(seed_arr, thr_arr)

    count = jnp.sum(partials[:, 0, 0])
    percent = jnp.maximum(count / np.float32(n_valid), np.float32(_PERCENT_EPS))
    invp_arr = jnp.reshape((1.0 / percent).astype(jnp.float32), (1,))

    # ---- pass 2: tiled, pipelined element-wise distortion -------------------
    itemsize = int(np.dtype(x2d.dtype).itemsize)
    out = pl.pallas_call(
        _make_disout_kernel(tile_rows),
        out_shape=jax.ShapeDtypeStruct((padded_rows, _LANES), x2d.dtype),
        grid=(num_tiles,),
        in_specs=[smem, smem, smem, smem, smem,
                  pl.BlockSpec((tile_rows, _LANES), lambda i: (i, 0))],
        out_specs=pl.BlockSpec((tile_rows, _LANES), lambda i: (i, 0)),
        compiler_params=pltpu.CompilerParams(
            dimension_semantics=("parallel",),
            vmem_limit_bytes=32 * 1024 * 1024),
        cost_estimate=pl.CostEstimate(flops=12 * n_pad, transcendentals=0,
                                      bytes_accessed=2 * n_pad * itemsize),
    )(seed_arr, thr_arr, c1_arr, c2_arr, invp_arr, x2d)
    return out


class Disout:
    """Element-wise (block_size=1) Disout, forward only (training mode)."""

    def __init__(self, dist_prob=0.0, alpha=1.0, seed=0):
        self.dist_prob = float(dist_prob)
        self.alpha = float(alpha)
        self._seed = int(seed)
        self._calls = 0
        self._last_params = None

    def __call__(self, x):
        dist_prob = float(self.dist_prob)
        seed = self._seed + self._calls * 1000003    # fresh per-call base seed
        self._calls += 1

        if dist_prob <= 0.0:
            # keep==1 everywhere, percent==1, dist==0  ->  identity; skip kernels
            self._last_params = None
            return x

        shape = x.shape
        n = int(np.prod(shape))
        assert 0 < n < 2 ** 31, "element count must fit int32 indexing"
        rows = -(-n // _LANES)
        tile_rows = min(_MAX_TILE_ROWS, _round_up(rows, 8))
        padded_rows = _round_up(rows, tile_rows)
        padded_n = padded_rows * _LANES

        # host-side scalar precompute (traced values -> no recompiles on anneal)
        seed_mix = (seed * _SEED_PRIME) & 0xFFFFFFFF
        if seed_mix >= 2 ** 31:
            seed_mix -= 2 ** 32
        thr = int(min(max(math.ceil(dist_prob * _MANT_SCALE), 0), 1 << _MANT_BITS))
        c = self.alpha * 0.01
        c1 = c / _MANT_SCALE
        c2 = 0.5 * c

        xf = jnp.reshape(x, (-1,))
        if padded_n != n:
            xf = jnp.pad(xf, (0, padded_n - n))
        x2d = jnp.reshape(xf, (padded_rows, _LANES))

        out2d = _disout_forward(x2d, jnp.int32(seed_mix), jnp.int32(thr),
                                jnp.float32(c1), jnp.float32(c2),
                                tile_rows=tile_rows, n_valid=n)
        out = jnp.reshape(jnp.reshape(out2d, (-1,))[:n], shape)

        # stash for the reference check
        self._last_params = dict(seed_mix=seed_mix, thr=thr, n=n,
                                 padded_n=padded_n)
        return out


class LinearScheduler:
    """Faithful port of the PyTorch LinearScheduler wrapper."""

    def __init__(self, disout, start_value, stop_value, nr_steps):
        self.disout = disout
        self.i = 0
        self.drop_values = np.linspace(start=start_value, stop=stop_value,
                                       num=nr_steps)

    def forward(self, x):
        return self.disout(x)

    __call__ = forward

    def step(self):
        if self.i < len(self.drop_values):
            self.disout.dist_prob = float(self.drop_values[self.i])
        self.i += 1


def _reference(x, params, alpha):
    """Host reference using the identical hash stream (float64 math)."""
    n, padded_n = params["n"], params["padded_n"]
    idx = jnp.arange(padded_n, dtype=jnp.int32)
    m = np.asarray(_mantissa(idx, jnp.int32(params["seed_mix"])))[:n]
    keep = m >= params["thr"]
    percent = max(float(keep.sum()) / n, _PERCENT_EPS)
    u = m.astype(np.float64) / _MANT_SCALE
    xf = np.asarray(x, dtype=np.float64).reshape(-1)
    out = np.where(keep, xf / percent, alpha * 0.01 * (u - 0.5))
    return out.reshape(x.shape).astype(np.asarray(x).dtype)


if __name__ == "__main__":
    key = jax.random.PRNGKey(0)
    x = jax.random.normal(key, (2, 4, 16, 16), dtype=jnp.float32)  # NCHW

    sched = LinearScheduler(Disout(dist_prob=0.0, alpha=1.0, seed=0),
                            start_value=0.0, stop_value=0.5, nr_steps=5)

    # anneal dist_prob a few times, then run the forward pass (Pallas kernels)
    for _ in range(3):
        sched.step()
    out = jax.block_until_ready(sched(x))

    assert out.shape == x.shape and out.dtype == x.dtype
    params = sched.disout._last_params
    assert params is not None
    ref = _reference(x, params, sched.disout.alpha)
    np.testing.assert_allclose(np.asarray(out), ref, rtol=1e-5, atol=1e-5)

    print("KERNEL_OK")
</pallas_src>

<mosaic_0001>
module attributes {stable_mosaic.version = 11 : i64} {
  func.func @kernel(%arg0: i32, %arg1: memref<1xi32, #tpu.memory_space<smem>>, %arg2: memref<1xi32, #tpu.memory_space<smem>>, %arg3: memref<1x8x128xf32, #tpu.memory_space<vmem>>) attributes {dimension_semantics = [#tpu.dimension_semantics<parallel>], iteration_bounds = array<i64: 1>, scalar_prefetch = 0 : i64, scratch_operands = 0 : i64, tpu.core_type = #tpu.core_type<tc>, window_params = [{transform_indices = @transform_0, window_bounds = array<i64: 1>}, {transform_indices = @transform_1, window_bounds = array<i64: 1>}, {transform_indices = @transform_2, window_bounds = array<i64: 1, 8, 128>}]} {
    %0 = tpu.iota {dimensions = array<i32: 0>} : vector<16x128xi32>
    %1 = tpu.iota {dimensions = array<i32: 1>} : vector<16x128xi32>
    %c128_i32 = arith.constant 128 : i32
    %2 = vector.broadcast %c128_i32 : i32 to vector<16x128xi32>
    %3 = arith.muli %0, %2 : vector<16x128xi32>
    %4 = arith.addi %3, %1 : vector<16x128xi32>
    %c2048_i32 = arith.constant 2048 : i32
    %5 = arith.muli %arg0, %c2048_i32 : i32
    %6 = vector.broadcast %5 : i32 to vector<16x128xi32>
    %7 = arith.addi %4, %6 : vector<16x128xi32>
    %c0 = arith.constant 0 : index
    %8 = memref.load %arg1[%c0] : memref<1xi32, #tpu.memory_space<smem>>
    %9 = vector.broadcast %8 : i32 to vector<16x128xi32>
    %10 = arith.xori %7, %9 : vector<16x128xi32>
    %c-1640531527_i32 = arith.constant -1640531527 : i32
    %11 = vector.broadcast %c-1640531527_i32 : i32 to vector<16x128xi32>
    %12 = arith.muli %10, %11 : vector<16x128xi32>
    %c16_i32 = arith.constant 16 : i32
    %13 = vector.broadcast %c16_i32 : i32 to vector<16x128xi32>
    %14 = arith.shrsi %12, %13 : vector<16x128xi32>
    %c65535_i32 = arith.constant 65535 : i32
    %15 = vector.broadcast %c65535_i32 : i32 to vector<16x128xi32>
    %16 = arith.andi %14, %15 : vector<16x128xi32>
    %17 = arith.xori %12, %16 : vector<16x128xi32>
    %c2146121005_i32 = arith.constant 2146121005 : i32
    %18 = vector.broadcast %c2146121005_i32 : i32 to vector<16x128xi32>
    %19 = arith.muli %17, %18 : vector<16x128xi32>
    %c15_i32 = arith.constant 15 : i32
    %20 = vector.broadcast %c15_i32 : i32 to vector<16x128xi32>
    %21 = arith.shrsi %19, %20 : vector<16x128xi32>
    %c131071_i32 = arith.constant 131071 : i32
    %22 = vector.broadcast %c131071_i32 : i32 to vector<16x128xi32>
    %23 = arith.andi %21, %22 : vector<16x128xi32>
    %24 = arith.xori %19, %23 : vector<16x128xi32>
    %c-2073310581_i32 = arith.constant -2073310581 : i32
    %25 = vector.broadcast %c-2073310581_i32 : i32 to vector<16x128xi32>
    %26 = arith.muli %24, %25 : vector<16x128xi32>
    %c16_i32_0 = arith.constant 16 : i32
    %27 = vector.broadcast %c16_i32_0 : i32 to vector<16x128xi32>
    %28 = arith.shrsi %26, %27 : vector<16x128xi32>
    %c65535_i32_1 = arith.constant 65535 : i32
    %29 = vector.broadcast %c65535_i32_1 : i32 to vector<16x128xi32>
    %30 = arith.andi %28, %29 : vector<16x128xi32>
    %31 = arith.xori %26, %30 : vector<16x128xi32>
    %c9_i32 = arith.constant 9 : i32
    %32 = vector.broadcast %c9_i32 : i32 to vector<16x128xi32>
    %33 = arith.shrsi %31, %32 : vector<16x128xi32>
    %c8388607_i32 = arith.constant 8388607 : i32
    %34 = vector.broadcast %c8388607_i32 : i32 to vector<16x128xi32>
    %35 = arith.andi %33, %34 : vector<16x128xi32>
    %c0_2 = arith.constant 0 : index
    %36 = memref.load %arg2[%c0_2] : memref<1xi32, #tpu.memory_space<smem>>
    %37 = vector.broadcast %36 : i32 to vector<16x128xi32>
    %38 = arith.cmpi sge, %35, %37 : vector<16x128xi32>
    %c2048_i32_3 = arith.constant 2048 : i32
    %39 = vector.broadcast %c2048_i32_3 : i32 to vector<16x128xi32>
    %40 = arith.cmpi slt, %7, %39 : vector<16x128xi32>
    %41 = arith.andi %38, %40 : vector<16x128xi1>
    %42 = arith.extui %41 : vector<16x128xi1> to vector<16x128xi32>
    %43 = arith.sitofp %42 : vector<16x128xi32> to vector<16x128xf32>
    %44 = vector.shape_cast %43 : vector<16x128xf32> to vector<1x16x128xf32>
    %cst = arith.constant dense<0.000000e+00> : vector<1xf32>
    %45 = vector.multi_reduction <add>, %44, %cst [1, 2] : vector<1x16x128xf32> to vector<1xf32>
    %46 = vector.shape_cast %45 : vector<1xf32> to vector<1x1x1xf32>
    %47 = vector.extract %46[0, 0, 0] : f32 from vector<1x1x1xf32>
    %48 = vector.broadcast %47 : f32 to vector<8x128xf32>
    %c0_4 = arith.constant 0 : index
    %c0_5 = arith.constant 0 : index
    %c0_6 = arith.constant 0 : index
    %49 = vector.load %arg3[%c0_4, %c0_5, %c0_6] : memref<1x8x128xf32, #tpu.memory_space<vmem>>, vector<1x8x128xf32>
    %50 = vector.shape_cast %49 : vector<1x8x128xf32> to vector<8x128xf32>
    %51 = vector.shape_cast %48 : vector<8x128xf32> to vector<1x8x128xf32>
    tpu.vector_store %arg3[%c0_4, %c0_5, %c0_6], %51 {strides = array<i32>} : memref<1x8x128xf32, #tpu.memory_space<vmem>>, vector<1x8x128xf32>,
    return
  }
  func.func @transform_0(%arg0: i32) -> i32 {
    %c0_i32 = arith.constant 0 : i32
    %c0_i32_0 = arith.constant 0 : i32
    return %c0_i32 : i32
  }
  func.func @transform_1(%arg0: i32) -> i32 {
    %c0_i32 = arith.constant 0 : i32
    %c0_i32_0 = arith.constant 0 : i32
    return %c0_i32 : i32
  }
  func.func @transform_2(%arg0: i32) -> (i32, i32, i32) {
    %c0_i32 = arith.constant 0 : i32
    %c0_i32_0 = arith.constant 0 : i32
    %c0_i32_1 = arith.constant 0 : i32
    return %arg0, %c0_i32, %c0_i32_0 : i32, i32, i32
  }
}

module attributes {stable_mosaic.version = 11 : i64} {
  func.func @kernel(%arg0: i32, %arg1: memref<1xi32, #tpu.memory_space<smem>>, %arg2: memref<1xi32, #tpu.memory_space<smem>>, %arg3: memref<1xf32, #tpu.memory_space<smem>>, %arg4: memref<1xf32, #tpu.memory_space<smem>>, %arg5: memref<1xf32, #tpu.memory_space<smem>>, %arg6: memref<16x128xf32, #tpu.memory_space<vmem>>, %arg7: memref<16x128xf32, #tpu.memory_space<vmem>>) attributes {dimension_semantics = [#tpu.dimension_semantics<parallel>], iteration_bounds = array<i64: 1>, scalar_prefetch = 0 : i64, scratch_operands = 0 : i64, tpu.core_type = #tpu.core_type<tc>, window_params = [{transform_indices = @transform_0, window_bounds = array<i64: 1>}, {transform_indices = @transform_1, window_bounds = array<i64: 1>}, {transform_indices = @transform_2, window_bounds = array<i64: 1>}, {transform_indices = @transform_3, window_bounds = array<i64: 1>}, {transform_indices = @transform_4, window_bounds = array<i64: 1>}, {transform_indices = @transform_5, window_bounds = array<i64: 16, 128>}, {transform_indices = @transform_6, window_bounds = array<i64: 16, 128>}]} {
    %0 = tpu.iota {dimensions = array<i32: 0>} : vector<16x128xi32>
    %1 = tpu.iota {dimensions = array<i32: 1>} : vector<16x128xi32>
    %c128_i32 = arith.constant 128 : i32
    %2 = vector.broadcast %c128_i32 : i32 to vector<16x128xi32>
    %3 = arith.muli %0, %2 : vector<16x128xi32>
    %4 = arith.addi %3, %1 : vector<16x128xi32>
    %c2048_i32 = arith.constant 2048 : i32
    %5 = arith.muli %arg0, %c2048_i32 : i32
    %6 = vector.broadcast %5 : i32 to vector<16x128xi32>
    %7 = arith.addi %4, %6 : vector<16x128xi32>
    %c0 = arith.constant 0 : index
    %8 = memref.load %arg1[%c0] : memref<1xi32, #tpu.memory_space<smem>>
    %9 = vector.broadcast %8 : i32 to vector<16x128xi32>
    %10 = arith.xori %7, %9 : vector<16x128xi32>
    %c-1640531527_i32 = arith.constant -1640531527 : i32
    %11 = vector.broadcast %c-1640531527_i32 : i32 to vector<16x128xi32>
    %12 = arith.muli %10, %11 : vector<16x128xi32>
    %c16_i32 = arith.constant 16 : i32
    %13 = vector.broadcast %c16_i32 : i32 to vector<16x128xi32>
    %14 = arith.shrsi %12, %13 : vector<16x128xi32>
    %c65535_i32 = arith.constant 65535 : i32
    %15 = vector.broadcast %c65535_i32 : i32 to vector<16x128xi32>
    %16 = arith.andi %14, %15 : vector<16x128xi32>
    %17 = arith.xori %12, %16 : vector<16x128xi32>
    %c2146121005_i32 = arith.constant 2146121005 : i32
    %18 = vector.broadcast %c2146121005_i32 : i32 to vector<16x128xi32>
    %19 = arith.muli %17, %18 : vector<16x128xi32>
    %c15_i32 = arith.constant 15 : i32
    %20 = vector.broadcast %c15_i32 : i32 to vector<16x128xi32>
    %21 = arith.shrsi %19, %20 : vector<16x128xi32>
    %c131071_i32 = arith.constant 131071 : i32
    %22 = vector.broadcast %c131071_i32 : i32 to vector<16x128xi32>
    %23 = arith.andi %21, %22 : vector<16x128xi32>
    %24 = arith.xori %19, %23 : vector<16x128xi32>
    %c-2073310581_i32 = arith.constant -2073310581 : i32
    %25 = vector.broadcast %c-2073310581_i32 : i32 to vector<16x128xi32>
    %26 = arith.muli %24, %25 : vector<16x128xi32>
    %c16_i32_0 = arith.constant 16 : i32
    %27 = vector.broadcast %c16_i32_0 : i32 to vector<16x128xi32>
    %28 = arith.shrsi %26, %27 : vector<16x128xi32>
    %c65535_i32_1 = arith.constant 65535 : i32
    %29 = vector.broadcast %c65535_i32_1 : i32 to vector<16x128xi32>
    %30 = arith.andi %28, %29 : vector<16x128xi32>
    %31 = arith.xori %26, %30 : vector<16x128xi32>
    %c9_i32 = arith.constant 9 : i32
    %32 = vector.broadcast %c9_i32 : i32 to vector<16x128xi32>
    %33 = arith.shrsi %31, %32 : vector<16x128xi32>
    %c8388607_i32 = arith.constant 8388607 : i32
    %34 = vector.broadcast %c8388607_i32 : i32 to vector<16x128xi32>
    %35 = arith.andi %33, %34 : vector<16x128xi32>
    %c0_2 = arith.constant 0 : index
    %36 = memref.load %arg2[%c0_2] : memref<1xi32, #tpu.memory_space<smem>>
    %37 = vector.broadcast %36 : i32 to vector<16x128xi32>
    %38 = arith.cmpi sge, %35, %37 : vector<16x128xi32>
    %c0_3 = arith.constant 0 : index
    %c0_4 = arith.constant 0 : index
    %39 = vector.load %arg6[%c0_3, %c0_4] : memref<16x128xf32, #tpu.memory_space<vmem>>, vector<16x128xf32>
    %c0_5 = arith.constant 0 : index
    %40 = memref.load %arg5[%c0_5] : memref<1xf32, #tpu.memory_space<smem>>
    %41 = vector.broadcast %40 : f32 to vector<16x128xf32>
    %42 = arith.mulf %39, %41 : vector<16x128xf32>
    %43 = arith.sitofp %35 : vector<16x128xi32> to vector<16x128xf32>
    %c0_6 = arith.constant 0 : index
    %44 = memref.load %arg3[%c0_6] : memref<1xf32, #tpu.memory_space<smem>>
    %45 = vector.broadcast %44 : f32 to vector<16x128xf32>
    %46 = arith.mulf %43, %45 : vector<16x128xf32>
    %c0_7 = arith.constant 0 : index
    %47 = memref.load %arg4[%c0_7] : memref<1xf32, #tpu.memory_space<smem>>
    %48 = vector.broadcast %47 : f32 to vector<16x128xf32>
    %49 = arith.subf %46, %48 : vector<16x128xf32>
    %50 = arith.select %38, %42, %49 : vector<16x128xi1>, vector<16x128xf32>
    %c0_8 = arith.constant 0 : index
    %c0_9 = arith.constant 0 : index
    %51 = vector.load %arg7[%c0_8, %c0_9] : memref<16x128xf32, #tpu.memory_space<vmem>>, vector<16x128xf32>
    tpu.vector_store %arg7[%c0_8, %c0_9], %50 {strides = array<i32>} : memref<16x128xf32, #tpu.memory_space<vmem>>, vector<16x128xf32>,
    return
  }
  func.func @transform_0(%arg0: i32) -> i32 {
    %c0_i32 = arith.constant 0 : i32
    %c0_i32_0 = arith.constant 0 : i32
    return %c0_i32 : i32
  }
  func.func @transform_1(%arg0: i32) -> i32 {
    %c0_i32 = arith.constant 0 : i32
    %c0_i32_0 = arith.constant 0 : i32
    return %c0_i32 : i32
  }
  func.func @transform_2(%arg0: i32) -> i32 {
    %c0_i32 = arith.constant 0 : i32
    %c0_i32_0 = arith.constant 0 : i32
    return %c0_i32 : i32
  }
  func.func @transform_3(%arg0: i32) -> i32 {
    %c0_i32 = arith.constant 0 : i32
    %c0_i32_0 = arith.constant 0 : i32
    return %c0_i32 : i32
  }
  func.func @transform_4(%arg0: i32) -> i32 {
    %c0_i32 = arith.constant 0 : i32
    %c0_i32_0 = arith.constant 0 : i32
    return %c0_i32 : i32
  }
  func.func @transform_5(%arg0: i32) -> (i32, i32) {
    %c0_i32 = arith.constant 0 : i32
    %c0_i32_0 = arith.constant 0 : i32
    return %arg0, %c0_i32 : i32, i32
  }
  func.func @transform_6(%arg0: i32) -> (i32, i32) {
    %c0_i32 = arith.constant 0 : i32
    %c0_i32_0 = arith.constant 0 : i32
    return %arg0, %c0_i32 : i32, i32
  }
}

</mosaic_0001>

<llo_original>
// kernel: _disout_forward.2
$region0: #{_disout_forward.2}
  #allocation0 [shape = 'u32[]', space=smem, size = 0x4, offset = 0x4, fixed_abs, tag = 'smem constant byte address 0x4 - core index']
  #allocation1 [shape = 'u32[144,128]{1,0:T(1,128)}', space=vmem, size = 0x12000, scoped, tag = 'internal scratch']
  #allocation2 [shape = 's32[1]{0:T(128)S(6)}', space=smem, size = 0x200, scoped, tag = 'scoped memory for _disout_forward.2']
  #allocation3 [shape = 's32[1]{0:T(128)S(6)}', space=smem, size = 0x200, scoped, tag = 'scoped memory for _disout_forward.2']
  %s0 = inlined_call_operand.<no memory space> [shape: s32[1], index: 0, kind: input, shape index: {}]
  %s1 = inlined_call_operand.<no memory space> [shape: s32[1], index: 1, kind: input, shape index: {}]
  %s2 = inlined_call_operand.vmem [shape: f32[1,8,128], index: 2, kind: output, shape index: {}]
  %s3 = sld [smem:[#allocation0]]
  $region18: #{_disout_forward.2} parent=0
    _
  %s5 = ssub.s32 1, %s3
  %s6 = scalar_select 0, %s5, %s3
  %7 = sst [smem:[#allocation2]] %s0
  %8 = sst [smem:[#allocation3]] %s1
  // Predicated region
  $region2: #{_disout_forward.2} parent=0 // pred_check
    _
  $region3: #{_disout_forward.2} parent=0 // pred_check_branch
    %10 = sbr.rel (0) target = $region5
  $region4: #{_disout_forward.2} parent=0 // pred_region
    _
  $region5: #{_disout_forward.2} parent=0 // pred_fallthru
    _
  // Predicated region
  $region6: #{_disout_forward.2} parent=0 // pred_check
    _
  $region7: #{_disout_forward.2} parent=0 // pred_check_branch
    %12 = sbr.rel (0) target = $region9
  $region8: #{_disout_forward.2} parent=0 // pred_region
    _
  $region9: #{_disout_forward.2} parent=0 // pred_fallthru
    _
  %v13 = vlaneseq
  %v14 = vshrl.u32 %v13, 7
  %v15 = vadd.s32 %v14, 8
  %v16 = vlaneseq
  %v17 = vand.u32 %v16, 127
  %v18 = vmul.u32 %v14, 128
  %v19 = vmul.u32 %v15, 128
  %v20 = vadd.s32 %v18, %v17
  %v21 = vadd.s32 %v19, %v17
  %s22 = smul.u32 0, 2048
  %v23 = vstv %s22
  %v24 = vadd.s32 %v20, %v23
  %v25 = vadd.s32 %v21, %v23
  %s26 = sld [smem:[#allocation2]]
  %v27 = vstv %s26
  %v28 = vxor.u32 %v24, %v27
  %v29 = vxor.u32 %v25, %v27
  %v30 = vmul.u32 %v28, 2654435769
  %v31 = vmul.u32 %v29, 2654435769
  %v32 = vshra.s32 %v30, 16
  %v33 = vshra.s32 %v31, 16
  %v34 = vand.u32 %v32, 65535
  %v35 = vand.u32 %v33, 65535
  %v36 = vxor.u32 %v30, %v34
  %v37 = vxor.u32 %v31, %v35
  %v38 = vmul.u32 %v36, 2146121005
  %v39 = vmul.u32 %v37, 2146121005
  %v40 = vshra.s32 %v38, 15
  %v41 = vshra.s32 %v39, 15
  %v42 = vand.u32 %v40, 131071
  %v43 = vand.u32 %v41, 131071
  %v44 = vxor.u32 %v38, %v42
  %v45 = vxor.u32 %v39, %v43
  %v46 = vmul.u32 %v44, 2221656715
  %v47 = vmul.u32 %v45, 2221656715
  %v48 = vshra.s32 %v46, 16
  %v49 = vshra.s32 %v47, 16
  %v50 = vand.u32 %v48, 65535
  %v51 = vand.u32 %v49, 65535
  %v52 = vxor.u32 %v46, %v50
  %v53 = vxor.u32 %v47, %v51
  %v54 = vshra.s32 %v52, 9
  %v55 = vshra.s32 %v53, 9
  %v56 = vand.u32 %v54, 8388607
  %v57 = vand.u32 %v55, 8388607
  %s58 = sld [smem:[#allocation3]]
  %v59 = vstv %s58
  %vm60 = vcmp.ge.s32.totalorder %v56, %v59
  %vm61 = vcmp.ge.s32.totalorder %v57, %v59
  %vm62 = vcmp.lt.s32.totalorder %v24, 2048
  %vm63 = vcmp.lt.s32.totalorder %v25, 2048
  %vm64 = vmand %vm60, %vm62
  %vm65 = vmand %vm61, %vm63
  %v66 = vsel %vm64, 1, 0
  %v67 = vsel %vm65, 1, 0
  %v68 = vcvt.s32.f32 %v66
  %v69 = vcvt.s32.f32 %v67
  %v70 = vadd.f32 %v68, %v69
  %71 = vadd.xlane.f32.xlu0 %v70
  %v72 = vpop.xlane.xlu0 %71
  %v73 = vrot.slane %v72, 4
  %v74 = vadd.f32 %v72, %v73
  %v75 = vrot.slane %v74, 2
  %v76 = vadd.f32 %v74, %v75
  %v77 = vrot.slane %v76, 1
  %v78 = vadd.f32 %v76, %v77
  %s79 = vtos %v78
  %v80 = vstv %s79
  %81 = vst [vmem:[%s2] sm:$0xff] %v80
  // Predicated region
  $region10: #{_disout_forward.2} parent=0 // pred_check
    _
  $region11: #{_disout_forward.2} parent=0 // pred_check_branch
    %83 = sbr.rel (0) target = $region13
  $region12: #{_disout_forward.2} parent=0 // pred_region
    _
  $region13: #{_disout_forward.2} parent=0 // pred_fallthru
    _
  // Predicated region
  $region14: #{_disout_forward.2} parent=0 // pred_check
    _
  $region15: #{_disout_forward.2} parent=0 // pred_check_branch
    %85 = sbr.rel (0) target = $region17
  $region16: #{_disout_forward.2} parent=0 // pred_region
    _
  $region17: #{_disout_forward.2} parent=0 // pred_fallthru
    _

// kernel: _disout_forward.3
$region0: #{_disout_forward.3}
  #allocation0 [shape = 'u32[]', space=smem, size = 0x4, offset = 0x4, fixed_abs, tag = 'smem constant byte address 0x4 - core index']
  #allocation1 [shape = 'u32[144,128]{1,0:T(1,128)}', space=vmem, size = 0x12000, scoped, tag = 'internal scratch']
  #allocation2 [shape = 's32[1]{0:T(128)S(6)}', space=smem, size = 0x200, scoped, tag = 'scoped memory for _disout_forward.3']
  #allocation3 [shape = 's32[1]{0:T(128)S(6)}', space=smem, size = 0x200, scoped, tag = 'scoped memory for _disout_forward.3']
  #allocation4 [shape = 'f32[1]{0:T(128)S(6)}', space=smem, size = 0x200, scoped, tag = 'scoped memory for _disout_forward.3']
  #allocation5 [shape = 'f32[1]{0:T(128)S(6)}', space=smem, size = 0x200, scoped, tag = 'scoped memory for _disout_forward.3']
  #allocation6 [shape = 'f32[1]{0:T(128)S(6)}', space=smem, size = 0x200, scoped, tag = 'scoped memory for _disout_forward.3']
  %s0 = inlined_call_operand.<no memory space> [shape: s32[1], index: 0, kind: input, shape index: {}]
  %s1 = inlined_call_operand.<no memory space> [shape: s32[1], index: 1, kind: input, shape index: {}]
  %s2 = inlined_call_operand.<no memory space> [shape: f32[1], index: 2, kind: input, shape index: {}]
  %s3 = inlined_call_operand.<no memory space> [shape: f32[1], index: 3, kind: input, shape index: {}]
  %s4 = inlined_call_operand.<no memory space> [shape: f32[1], index: 4, kind: input, shape index: {}]
  %s5 = inlined_call_operand.vmem [shape: f32[16,128], index: 5, kind: input, shape index: {}]
  %s6 = inlined_call_operand.hbm [shape: f32[16,128], index: 6, kind: output, shape index: {}]
  %s7 = sld [smem:[#allocation0]]
  $region34: #{_disout_forward.3} parent=0
    _
  %s9 = ssub.s32 1, %s7
  %s10 = scalar_select 0, %s9, %s7
  %11 = sst [smem:[#allocation2]] %s0
  %12 = sst [smem:[#allocation3]] %s1
  %13 = sst [smem:[#allocation4]] %s2
  %14 = sst [smem:[#allocation5]] %s3
  %15 = sst [smem:[#allocation6]] %s4
  $region1: #{_disout_forward.3} parent=0
    #allocation7 [shape = 'u8[8192]{0}', space=vmem, size = 0x2000, scoped, tag = 'output window, operand 0, single buffered']
    #allocation8 [shape = 's32[1]{0}', space=sflag, size = 0x4, scoped, tag = 'scoped memory for _disout_forward.3']
    %16 = vsyncpa [#allocation8], 0
    // Predicated region
    $region2: #{_disout_forward.3} parent=1 // pred_check
      _
    $region3: #{_disout_forward.3} parent=1 // pred_check_branch
      %18 = sbr.rel (0) target = $region5
    $region4: #{_disout_forward.3} parent=1 // pred_region
      _
    $region5: #{_disout_forward.3} parent=1 // pred_fallthru
      _
    // Predicated region
    $region6: #{_disout_forward.3} parent=1 // pred_check
      _
    $region7: #{_disout_forward.3} parent=1 // pred_check_branch
      %20 = sbr.rel (0) target = $region9
    $region8: #{_disout_forward.3} parent=1 // pred_region
      _
    $region9: #{_disout_forward.3} parent=1 // pred_fallthru
      _
    // Predicated region
    $region10: #{_disout_forward.3} parent=1 // pred_check
      _
    $region11: #{_disout_forward.3} parent=1 // pred_check_branch
      %22 = sbr.rel (0) target = $region13
    $region12: #{_disout_forward.3} parent=1 // pred_region
      _
    $region13: #{_disout_forward.3} parent=1 // pred_fallthru
      _
    // Predicated region
    $region14: #{_disout_forward.3} parent=1 // pred_check
      _
    $region15: #{_disout_forward.3} parent=1 // pred_check_branch
      %24 = sbr.rel (0) target = $region17
    $region16: #{_disout_forward.3} parent=1 // pred_region
      _
    $region17: #{_disout_forward.3} parent=1 // pred_fallthru
      _
    // Predicated region
    $region18: #{_disout_forward.3} parent=1 // pred_check
      _
    $region19: #{_disout_forward.3} parent=1 // pred_check_branch
      %26 = sbr.rel (0) target = $region21
    $region20: #{_disout_forward.3} parent=1 // pred_region
      _
    $region21: #{_disout_forward.3} parent=1 // pred_fallthru
      _
    // Predicated region
    $region22: #{_disout_forward.3} parent=1 // pred_check
      _
    $region23: #{_disout_forward.3} parent=1 // pred_check_branch
      %28 = sbr.rel (0) target = $region25
    $region24: #{_disout_forward.3} parent=1 // pred_region
      _
    $region25: #{_disout_forward.3} parent=1 // pred_fallthru
      _
    %v29 = vlaneseq
    %v30 = vshrl.u32 %v29, 7
    %v31 = vadd.s32 %v30, 8
    %v32 = vlaneseq
    %v33 = vand.u32 %v32, 127
    %v34 = vmul.u32 %v30, 128
    %v35 = vmul.u32 %v31, 128
    %v36 = vadd.s32 %v34, %v33
    %v37 = vadd.s32 %v35, %v33
    %s38 = smul.u32 0, 2048
    %v39 = vstv %s38
    %v40 = vadd.s32 %v36, %v39
    %v41 = vadd.s32 %v37, %v39
    %s42 = sld [smem:[#allocation2]]
    %v43 = vstv %s42
    %v44 = vxor.u32 %v40, %v43
    %v45 = vxor.u32 %v41, %v43
    %v46 = vmul.u32 %v44, 2654435769
    %v47 = vmul.u32 %v45, 2654435769
    %v48 = vshra.s32 %v46, 16
    %v49 = vshra.s32 %v47, 16
    %v50 = vand.u32 %v48, 65535
    %v51 = vand.u32 %v49, 65535
    %v52 = vxor.u32 %v46, %v50
    %v53 = vxor.u32 %v47, %v51
    %v54 = vmul.u32 %v52, 2146121005
    %v55 = vmul.u32 %v53, 2146121005
    %v56 = vshra.s32 %v54, 15
    %v57 = vshra.s32 %v55, 15
    %v58 = vand.u32 %v56, 131071
    %v59 = vand.u32 %v57, 131071
    %v60 = vxor.u32 %v54, %v58
    %v61 = vxor.u32 %v55, %v59
    %v62 = vmul.u32 %v60, 2221656715
    %v63 = vmul.u32 %v61, 2221656715
    %v64 = vshra.s32 %v62, 16
    %v65 = vshra.s32 %v63, 16
    %v66 = vand.u32 %v64, 65535
    %v67 = vand.u32 %v65, 65535
    %v68 = vxor.u32 %v62, %v66
    %v69 = vxor.u32 %v63, %v67
    %v70 = vshra.s32 %v68, 9
    %v71 = vshra.s32 %v69, 9
    %v72 = vand.u32 %v70, 8388607
    %v73 = vand.u32 %v71, 8388607
    %s74 = sld [smem:[#allocation3]]
    %v75 = vstv %s74
    %vm76 = vcmp.ge.s32.totalorder %v72, %v75
    %vm77 = vcmp.ge.s32.totalorder %v73, %v75
    %v78 = vld [vmem:[%s5] sm:$0xff]
    %v79 = vld [vmem:[%s5 + $0x8] sm:$0xff]
    %s80 = sld [smem:[#allocation6]]
    %v81 = vstv %s80
    %v82 = vmul.f32 %v78, %v81
    %v83 = vmul.f32 %v79, %v81
    %v84 = vcvt.s32.f32 %v72
    %v85 = vcvt.s32.f32 %v73
    %s86 = sld [smem:[#allocation4]]
    %v87 = vstv %s86
    %v88 = vmul.f32 %v84, %v87
    %v89 = vmul.f32 %v85, %v87
    %s90 = sld [smem:[#allocation5]]
    %v91 = vstv %s90
    %v92 = vsub.f32 %v88, %v91
    %v93 = vsub.f32 %v89, %v91
    %v94 = vsel %vm76, %v82, %v92
    %v95 = vsel %vm77, %v83, %v93
    %96 = vst [vmem:[#allocation7] sm:$0xff] %v94
    %97 = vst [vmem:[#allocation7 + $0x8] sm:$0xff] %v95
    // Predicated region
    $region26: #{_disout_forward.3} parent=1 // pred_check
      _
    $region27: #{_disout_forward.3} parent=1 // pred_check_branch
      %99 = sbr.rel (0) target = $region29
    $region28: #{_disout_forward.3} parent=1 // pred_region
      %s101 = ssub.s32 256, 256
      %102 = vsyncadd [#allocation8], %s101
      %s103 = sshll.u32 [#allocation7], 4
      %s104 = int_to_ptr.vmem [resolvable:$true] %s103
      %109 = dma.vmem_to_hbm [thread:$0]  %s104, 256, %s6, [#allocation8], 128, 128, 8
    $region29: #{_disout_forward.3} parent=1 // pred_fallthru
      _
    // Predicated region
    $region30: #{_disout_forward.3} parent=1 // pred_check
      _
    $region31: #{_disout_forward.3} parent=1 // pred_check_branch
      %111 = sbr.rel (0) target = $region33
    $region32: #{_disout_forward.3} parent=1 // pred_region
      %112 = dma.done [#allocation8], 256
    $region33: #{_disout_forward.3} parent=1 // pred_fallthru
      _
    %113 = vsyncpa [#allocation8], 1

</llo_original>
